<compile_context>
chip_gen: v5e
topology: v5e:2x2
jax: 0.10.0
libtpu: 0.0.40
codegen_flags: <defaults>
</compile_context>

<pallas_src>
import functools

import jax
import jax.numpy as jnp
from jax.experimental import pallas as pl
from jax.experimental.pallas import tpu as pltpu


def _round_up(x, m):
    return ((x + m - 1) // m) * m


def _act_dtype_for_device():
    """tanh compute dtype: bf16 on v6e/v7x (bf16 VPU/EUP), f32 on v5e & older."""
    try:
        kind = jax.devices()[0].device_kind.lower()
    except Exception:
        return jnp.float32
    for old in ("v2", "v3", "v4", "v5"):
        if old in kind:
            return jnp.float32
    return jnp.bfloat16


def _make_mlp_value_kernel(act_dtype):
    def kernel(x_ref, w1_ref, b1_ref, w2_ref, b2_ref, w3_ref, b3_ref, out_ref):
        # obs tile arrives in its native [Tb, obs_dim] layout; the bf16 cast and
        # the batch-on-lanes reorientation (trans-RHS matmul) happen in-kernel.
        x = x_ref[...].astype(jnp.bfloat16)                       # [Tb, obs_dim]
        z1 = (jnp.dot(w1_ref[...], x.T,
                      preferred_element_type=jnp.float32)
              + b1_ref[...])                                      # [h1, Tb] f32
        h1 = jnp.tanh(z1.astype(act_dtype)).astype(jnp.bfloat16)  # [h1, Tb] bf16
        z2 = (jnp.dot(w2_ref[...], h1,
                      preferred_element_type=jnp.float32)
              + b2_ref[...])                                      # [h2, Tb] f32
        h2 = jnp.tanh(z2.astype(act_dtype)).astype(jnp.bfloat16)  # [h2, Tb] bf16
        v = (jnp.dot(w3_ref[...], h2,
                     preferred_element_type=jnp.float32)
             + b3_ref[...])                                       # [1, Tb] f32
        # Lane-dense store ([1, Tb] with Tb a 128-multiple or the full batch).
        out_ref[...] = v.astype(out_ref.dtype)

    return kernel


def mlp_value_estimator(obs, params, *, batch_tile=8192):
    """obs: [B, obs_dim] f32; params: list of (W[out, in] f32, b[out, 1] f32)."""
    (w1, b1), (w2, b2), (w3, b3) = params
    B, obs_dim = obs.shape
    h1_dim, h2_dim = w1.shape[0], w2.shape[0]

    # --- batch tiling --------------------------------------------------------
    #  * tile_b is always a multiple of 128 in the multi-block case so the
    #    (8,128) BlockSpec constraint holds even for odd user-supplied tiles.
    #  * aim for >=2 grid steps when B allows, so the "parallel" grid axis can
    #    be split across both TensorCores on v7x.
    #  * if B fits in one tile, use B exactly (block == full dim: no padding,
    #    no masking).
    batch_tile = _round_up(max(int(batch_tile), 128), 128)
    half = _round_up(pl.cdiv(B, 2), 128)
    tile_b = max(128, min(batch_tile, half))
    if B <= tile_b:
        tile_b = B
    grid_b = pl.cdiv(B, tile_b)

    # bf16 MXU inputs (weights are tiny; cast is negligible), f32 biases.
    w1b, w2b, w3b = (w.astype(jnp.bfloat16) for w in (w1, w2, w3))
    b1f, b2f, b3f = (b.astype(jnp.float32) for b in (b1, b2, b3))

    pinned = lambda a: pl.BlockSpec(a.shape, lambda i: (0, 0))  # loaded once

    # --- VMEM budget (explicit, conservative) --------------------------------
    weight_bytes = sum(int(a.size) * a.dtype.itemsize
                       for a in (w1b, b1f, w2b, b2f, w3b, b3f))
    act_bytes = (tile_b * obs_dim * 2                         # bf16 copy of obs tile
                 + (h1_dim + h2_dim) * tile_b * (4 + 2 + 2)   # f32 z + bf16 tanh in/out
                 + tile_b * 4)                                # final [1, Tb] f32
    vmem_need = (2 * tile_b * obs_dim * 4                     # double-buffered obs tiles
                 + 2 * tile_b * 4                             # double-buffered out tiles
                 + 2 * weight_bytes                           # resident params (2 bufs)
                 + act_bytes
                 + (4 << 20))                                 # headroom
    # 32 MiB clamp keeps the limit safe on v7x (64 MiB physical); it also
    # overrides v5e's 16 MiB default.  (v6e could go higher for >16k tiles.)
    vmem_limit = int(max(16 << 20, min(32 << 20, vmem_need)))

    kernel = _make_mlp_value_kernel(_act_dtype_for_device())

    out = pl.pallas_call(
        kernel,
        out_shape=jax.ShapeDtypeStruct((1, B), jnp.float32),
        grid=(grid_b,),
        in_specs=[
            # obs streamed in native layout; partial last block handled by Pallas.
            # TODO(synk): if profiling shows exposed obs DMA at large tiles, add
            # pipeline_mode=pl.Buffered(3) to this spec only.
            pl.BlockSpec((tile_b, obs_dim), lambda i: (i, 0)),
            pinned(w1b), pinned(b1f),
            pinned(w2b), pinned(b2f),
            pinned(w3b), pinned(b3f),
        ],
        out_specs=pl.BlockSpec((1, tile_b), lambda i: (0, i)),  # lane-dense [1, Tb]
        compiler_params=pltpu.CompilerParams(
            dimension_semantics=("parallel",),   # shards batch across TCs on v7x
            vmem_limit_bytes=vmem_limit),
    )(obs, w1b, b1f, w2b, b2f, w3b, b3f)

    # torch.squeeze(network(obs), -1): [1, B] -> [B]
    return out[0]


def init_params(key, sizes):
    """PyTorch-Linear-style init; W stored [out, in], b stored [out, 1]."""
    params = []
    for i in range(len(sizes) - 1):
        key, kw, kb = jax.random.split(key, 3)
        bound = sizes[i] ** -0.5
        w = jax.random.uniform(kw, (sizes[i + 1], sizes[i]),
                               minval=-bound, maxval=bound, dtype=jnp.float32)
        b = jax.random.uniform(kb, (sizes[i + 1], 1),
                               minval=-bound, maxval=bound, dtype=jnp.float32)
        params.append((w, b))
    return params


def reference_forward(obs, params):
    """Plain-JAX f32 reference (batch-major, matches the PyTorch module)."""
    (w1, b1), (w2, b2), (w3, b3) = params
    h1 = jnp.tanh(obs @ w1.T + b1.T)
    h2 = jnp.tanh(h1 @ w2.T + b2.T)
    return jnp.squeeze(h2 @ w3.T + b3.T, axis=-1)


if __name__ == "__main__":
    key = jax.random.PRNGKey(0)
    obs_dim, hidden_sizes = 16, [32, 32]
    sizes = [obs_dim] + hidden_sizes + [1]

    key, k_par = jax.random.split(key)
    params = init_params(k_par, sizes)

    # batch=8: single exact block (block == full batch dim, no masking).
    # batch=300: two grid steps (tile_b=256) with a partial, masked last block.
    for batch in (8, 300):
        key, k_obs = jax.random.split(key)
        obs = jax.random.normal(k_obs, (batch, obs_dim), dtype=jnp.float32)

        out = jax.block_until_ready(mlp_value_estimator(obs, params))
        ref = reference_forward(obs, params)

        assert out.shape == (batch,), out.shape
        # bf16 MXU inputs (and bf16 tanh on v6e/v7x) -> loosened tolerance.
        assert jnp.allclose(out, ref, atol=5e-2, rtol=5e-2), (
            float(jnp.max(jnp.abs(out - ref))))

    print("KERNEL_OK")
</pallas_src>

<mosaic_0001>
module attributes {stable_mosaic.version = 11 : i64} {
  func.func @kernel(%arg0: i32, %arg1: memref<8x16xf32, #tpu.memory_space<vmem>>, %arg2: memref<32x16xbf16, #tpu.memory_space<vmem>>, %arg3: memref<32x1xf32, #tpu.memory_space<vmem>>, %arg4: memref<32x32xbf16, #tpu.memory_space<vmem>>, %arg5: memref<32x1xf32, #tpu.memory_space<vmem>>, %arg6: memref<1x32xbf16, #tpu.memory_space<vmem>>, %arg7: memref<1x1xf32, #tpu.memory_space<vmem>>, %arg8: memref<1x8xf32, #tpu.memory_space<vmem>>) attributes {dimension_semantics = [#tpu.dimension_semantics<parallel>], iteration_bounds = array<i64: 1>, scalar_prefetch = 0 : i64, scratch_operands = 0 : i64, tpu.core_type = #tpu.core_type<tc>, window_params = [{transform_indices = @transform_0, window_bounds = array<i64: 8, 16>}, {pipeline_mode = #tpu.pipeline_mode<synchronous>, transform_indices = @transform_1, window_bounds = array<i64: 32, 16>}, {pipeline_mode = #tpu.pipeline_mode<synchronous>, transform_indices = @transform_2, window_bounds = array<i64: 32, 1>}, {pipeline_mode = #tpu.pipeline_mode<synchronous>, transform_indices = @transform_3, window_bounds = array<i64: 32, 32>}, {pipeline_mode = #tpu.pipeline_mode<synchronous>, transform_indices = @transform_4, window_bounds = array<i64: 32, 1>}, {pipeline_mode = #tpu.pipeline_mode<synchronous>, transform_indices = @transform_5, window_bounds = array<i64: 1, 32>}, {pipeline_mode = #tpu.pipeline_mode<synchronous>, transform_indices = @transform_6, window_bounds = array<i64: 1, 1>}, {transform_indices = @transform_7, window_bounds = array<i64: 1, 8>}]} {
    %c0 = arith.constant 0 : index
    %c0_0 = arith.constant 0 : index
    %0 = vector.load %arg1[%c0, %c0_0] : memref<8x16xf32, #tpu.memory_space<vmem>>, vector<8x16xf32>
    %1 = arith.truncf %0 : vector<8x16xf32> to vector<8x16xbf16>
    %c0_1 = arith.constant 0 : index
    %c0_2 = arith.constant 0 : index
    %2 = vector.load %arg2[%c0_1, %c0_2] : memref<32x16xbf16, #tpu.memory_space<vmem>>, vector<32x16xbf16>
    %3 = tpu.transpose %1, [1, 0] : vector<8x16xbf16> -> vector<16x8xbf16>
    %cst = arith.constant dense<0.000000e+00> : vector<32x8xf32>
    %4 = tpu.matmul %2, %3, %cst {dimension_numbers = #tpu.dot_dimension_numbers<[1], [0], [0], [1], [0, 0, 1, 1], [], []>} : vector<32x16xbf16>, vector<16x8xbf16>, vector<32x8xf32> -> vector<32x8xf32>
    %c0_3 = arith.constant 0 : index
    %c0_4 = arith.constant 0 : index
    %5 = vector.load %arg3[%c0_3, %c0_4] : memref<32x1xf32, #tpu.memory_space<vmem>>, vector<32x1xf32>
    %6 = vector.broadcast %5 : vector<32x1xf32> to vector<32x8xf32>
    %7 = arith.addf %4, %6 : vector<32x8xf32>
    %8 = arith.truncf %7 : vector<32x8xf32> to vector<32x8xbf16>
    %9 = math.tanh %8 : vector<32x8xbf16>
    %c0_5 = arith.constant 0 : index
    %c0_6 = arith.constant 0 : index
    %10 = vector.load %arg4[%c0_5, %c0_6] : memref<32x32xbf16, #tpu.memory_space<vmem>>, vector<32x32xbf16>
    %cst_7 = arith.constant dense<0.000000e+00> : vector<32x8xf32>
    %11 = tpu.matmul %10, %9, %cst_7 {dimension_numbers = #tpu.dot_dimension_numbers<[1], [0], [0], [1], [0, 0, 1, 1], [], []>} : vector<32x32xbf16>, vector<32x8xbf16>, vector<32x8xf32> -> vector<32x8xf32>
    %c0_8 = arith.constant 0 : index
    %c0_9 = arith.constant 0 : index
    %12 = vector.load %arg5[%c0_8, %c0_9] : memref<32x1xf32, #tpu.memory_space<vmem>>, vector<32x1xf32>
    %13 = vector.broadcast %12 : vector<32x1xf32> to vector<32x8xf32>
    %14 = arith.addf %11, %13 : vector<32x8xf32>
    %15 = arith.truncf %14 : vector<32x8xf32> to vector<32x8xbf16>
    %16 = math.tanh %15 : vector<32x8xbf16>
    %c0_10 = arith.constant 0 : index
    %c0_11 = arith.constant 0 : index
    %17 = vector.load %arg6[%c0_10, %c0_11] : memref<1x32xbf16, #tpu.memory_space<vmem>>, vector<1x32xbf16>
    %cst_12 = arith.constant dense<0.000000e+00> : vector<1x8xf32>
    %18 = tpu.matmul %17, %16, %cst_12 {dimension_numbers = #tpu.dot_dimension_numbers<[1], [0], [0], [1], [0, 0, 1, 1], [], []>} : vector<1x32xbf16>, vector<32x8xbf16>, vector<1x8xf32> -> vector<1x8xf32>
    %c0_13 = arith.constant 0 : index
    %c0_14 = arith.constant 0 : index
    %19 = vector.load %arg7[%c0_13, %c0_14] : memref<1x1xf32, #tpu.memory_space<vmem>>, vector<1x1xf32>
    %20 = vector.broadcast %19 : vector<1x1xf32> to vector<1x8xf32>
    %21 = arith.addf %18, %20 : vector<1x8xf32>
    %c0_15 = arith.constant 0 : index
    %c0_16 = arith.constant 0 : index
    %22 = vector.load %arg8[%c0_15, %c0_16] : memref<1x8xf32, #tpu.memory_space<vmem>>, vector<1x8xf32>
    tpu.vector_store %arg8[%c0_15, %c0_16], %21 {strides = array<i32>} : memref<1x8xf32, #tpu.memory_space<vmem>>, vector<1x8xf32>,
    return
  }
  func.func @transform_0(%arg0: i32) -> (i32, i32) {
    %c0_i32 = arith.constant 0 : i32
    %c0_i32_0 = arith.constant 0 : i32
    return %arg0, %c0_i32 : i32, i32
  }
  func.func @transform_1(%arg0: i32) -> (i32, i32) {
    %c0_i32 = arith.constant 0 : i32
    %c0_i32_0 = arith.constant 0 : i32
    %c0_i32_1 = arith.constant 0 : i32
    return %c0_i32, %c0_i32_0 : i32, i32
  }
  func.func @transform_2(%arg0: i32) -> (i32, i32) {
    %c0_i32 = arith.constant 0 : i32
    %c0_i32_0 = arith.constant 0 : i32
    %c0_i32_1 = arith.constant 0 : i32
    return %c0_i32, %c0_i32_0 : i32, i32
  }
  func.func @transform_3(%arg0: i32) -> (i32, i32) {
    %c0_i32 = arith.constant 0 : i32
    %c0_i32_0 = arith.constant 0 : i32
    %c0_i32_1 = arith.constant 0 : i32
    return %c0_i32, %c0_i32_0 : i32, i32
  }
  func.func @transform_4(%arg0: i32) -> (i32, i32) {
    %c0_i32 = arith.constant 0 : i32
    %c0_i32_0 = arith.constant 0 : i32
    %c0_i32_1 = arith.constant 0 : i32
    return %c0_i32, %c0_i32_0 : i32, i32
  }
  func.func @transform_5(%arg0: i32) -> (i32, i32) {
    %c0_i32 = arith.constant 0 : i32
    %c0_i32_0 = arith.constant 0 : i32
    %c0_i32_1 = arith.constant 0 : i32
    return %c0_i32, %c0_i32_0 : i32, i32
  }
  func.func @transform_6(%arg0: i32) -> (i32, i32) {
    %c0_i32 = arith.constant 0 : i32
    %c0_i32_0 = arith.constant 0 : i32
    %c0_i32_1 = arith.constant 0 : i32
    return %c0_i32, %c0_i32_0 : i32, i32
  }
  func.func @transform_7(%arg0: i32) -> (i32, i32) {
    %c0_i32 = arith.constant 0 : i32
    %c0_i32_0 = arith.constant 0 : i32
    return %c0_i32, %arg0 : i32, i32
  }
}

</mosaic_0001>

<llo_original>
// kernel: tpu_custom_call.1
$region0: #{tpu_custom_call.1}
  #allocation0 [shape = 'u32[]', space=smem, size = 0x4, offset = 0x4, fixed_abs, tag = 'smem constant byte address 0x4 - core index']
  #allocation1 [shape = 'u32[72,128]{1,0:T(1,128)}', space=vmem, size = 0x9000, scoped, tag = 'internal scratch']
  #allocation2 [shape = 'f32[1,1]{1,0:T(1,128)S(1)}', space=vmem, size = 0x200, scoped, tag = 'scoped memory for tpu_custom_call.1']
  %s0 = inlined_call_operand.vmem [shape: f32[8,16], index: 0, kind: input, shape index: {}]
  %s1 = inlined_call_operand.vmem [shape: bf16[32,16], index: 1, kind: input, shape index: {}]
  %s2 = inlined_call_operand.vmem [shape: f32[32,1], index: 2, kind: input, shape index: {}]
  %s3 = inlined_call_operand.vmem [shape: bf16[32,32], index: 3, kind: input, shape index: {}]
  %s4 = inlined_call_operand.vmem [shape: f32[32,1], index: 4, kind: input, shape index: {}]
  %s5 = inlined_call_operand.vmem [shape: bf16[1,32], index: 5, kind: input, shape index: {}]
  %s6 = inlined_call_operand.<no memory space> [shape: f32[1,1], index: 6, kind: input, shape index: {}]
  %s7 = inlined_call_operand.hbm [shape: f32[1,8], index: 7, kind: output, shape index: {}]
  %s8 = sld [smem:[#allocation0]]
  $region38: #{tpu_custom_call.1} parent=0
    _
  %s10 = ssub.s32 1, %s8
  %s11 = scalar_select 0, %s10, %s8
  %v12 = vstv %s6
  %13 = vst [vmem:[#allocation2] sm:$0x1] %v12
  $region1: #{tpu_custom_call.1} parent=0
    #allocation3 [shape = 'u8[512]{0}', space=vmem, size = 0x400, scoped, tag = 'output window, operand 0, single buffered']
    #allocation4 [shape = 's32[1]{0}', space=sflag, size = 0x4, scoped, tag = 'scoped memory for tpu_custom_call.1']
    %14 = vsyncpa [#allocation4], 0
    // Predicated region
    $region2: #{tpu_custom_call.1} parent=1 // pred_check
      _
    $region3: #{tpu_custom_call.1} parent=1 // pred_check_branch
      %16 = sbr.rel (0) target = $region5
    $region4: #{tpu_custom_call.1} parent=1 // pred_region
      _
    $region5: #{tpu_custom_call.1} parent=1 // pred_fallthru
      _
    // Predicated region
    $region6: #{tpu_custom_call.1} parent=1 // pred_check
      _
    $region7: #{tpu_custom_call.1} parent=1 // pred_check_branch
      %18 = sbr.rel (0) target = $region9
    $region8: #{tpu_custom_call.1} parent=1 // pred_region
      _
    $region9: #{tpu_custom_call.1} parent=1 // pred_fallthru
      _
    // Predicated region
    $region10: #{tpu_custom_call.1} parent=1 // pred_check
      _
    $region11: #{tpu_custom_call.1} parent=1 // pred_check_branch
      %20 = sbr.rel (0) target = $region13
    $region12: #{tpu_custom_call.1} parent=1 // pred_region
      _
    $region13: #{tpu_custom_call.1} parent=1 // pred_fallthru
      _
    // Predicated region
    $region14: #{tpu_custom_call.1} parent=1 // pred_check
      _
    $region15: #{tpu_custom_call.1} parent=1 // pred_check_branch
      %22 = sbr.rel (0) target = $region17
    $region16: #{tpu_custom_call.1} parent=1 // pred_region
      _
    $region17: #{tpu_custom_call.1} parent=1 // pred_fallthru
      _
    // Predicated region
    $region18: #{tpu_custom_call.1} parent=1 // pred_check
      _
    $region19: #{tpu_custom_call.1} parent=1 // pred_check_branch
      %24 = sbr.rel (0) target = $region21
    $region20: #{tpu_custom_call.1} parent=1 // pred_region
      _
    $region21: #{tpu_custom_call.1} parent=1 // pred_fallthru
      _
    // Predicated region
    $region22: #{tpu_custom_call.1} parent=1 // pred_check
      _
    $region23: #{tpu_custom_call.1} parent=1 // pred_check_branch
      %26 = sbr.rel (0) target = $region25
    $region24: #{tpu_custom_call.1} parent=1 // pred_region
      _
    $region25: #{tpu_custom_call.1} parent=1 // pred_fallthru
      _
    // Predicated region
    $region26: #{tpu_custom_call.1} parent=1 // pred_check
      _
    $region27: #{tpu_custom_call.1} parent=1 // pred_check_branch
      %28 = sbr.rel (0) target = $region29
    $region28: #{tpu_custom_call.1} parent=1 // pred_region
      _
    $region29: #{tpu_custom_call.1} parent=1 // pred_fallthru
      _
    %v30 = vld [vmem:[%s0] sm:$0xff]
    %v31 = vpack.c.bf16 %v30, %v30
    %v32 = vld [vmem:[%s1] sm:$0xf]
    %v33 = vld [vmem:[%s1 + $0x4] sm:$0xf]
    %v34 = vld [vmem:[%s1 + $0x8] sm:$0xf]
    %v35 = vld [vmem:[%s1 + $0xc] sm:$0xf]
    %v36 = vld [vmem:[%s2] sm:$0xff]
    %v37 = vld [vmem:[%s2 + $0x8] sm:$0xff]
    %v38 = vld [vmem:[%s2 + $0x10] sm:$0xff]
    %v39 = vld [vmem:[%s2 + $0x18] sm:$0xff]
    %41 = vset.pattern.permute.xlu0 0
    %42 = vperm.xlu0 %41, %v36
    %v43 = vpop.permute.xlu0 %42
    %46 = vset.pattern.permute.xlu0 0
    %47 = vperm.xlu0 %46, %v37
    %v48 = vpop.permute.xlu0 %47
    %51 = vset.pattern.permute.xlu0 0
    %52 = vperm.xlu0 %51, %v38
    %v53 = vpop.permute.xlu0 %52
    %56 = vset.pattern.permute.xlu0 0
    %57 = vperm.xlu0 %56, %v39
    %v58 = vpop.permute.xlu0 %57
    %v64 = vunpack.c.l.b16 %v32
    %v65 = vunpack.c.l.b16 %v33
    %v66 = vunpack.c.l.b16 %v34
    %v67 = vunpack.c.l.b16 %v35
    %v68 = vpack.c.b16 %v65, %v64
    %v69 = vpack.c.b16 %v67, %v66
    %vm70 = vcmask 130048
    %v72 = vsel %vm70, %v68, 0
    %v75 = vsel %vm70, %v69, 0
    %v78 = vsel %vm70, %v31, 0
    %80 = vmatpush.bf16.xpose.msra.mxu0 0
    %81 = vmatpush.bf16.xpose.msra.mxu0 0
    %82 = vmatpush.bf16.xpose.msra.mxu0 0
    %83 = vmatpush.bf16.xpose.msra.mxu0 0
    %84 = vmatpush.bf16.xpose.msra.mxu0 0
    %85 = vmatpush.bf16.xpose.msra.mxu0 0
    %86 = vmatpush.bf16.xpose.msra.mxu0 0
    %87 = vmatpush.bf16.xpose.msra.mxu0 %v78
    %88 = vmatmul.bf16.gmra.mxu0 %v72
    %v89 = vpop.f32.mrf.mxu0
    %v90 = vadd.f32 %v43, %v89
    %v91 = vpop.f32.mrf.mxu0
    %v92 = vadd.f32 %v48, %v91
    %93 = vmatmul.bf16.gmra.mxu0 %v75
    %v94 = vpop.f32.mrf.mxu0
    %v95 = vadd.f32 %v53, %v94
    %v96 = vpop.f32.mrf.mxu0
    %v97 = vadd.f32 %v58, %v96
    %98 = vdwg.mxu0
    %v99 = vpack.c.bf16 %v92, %v90
    %v100 = vpack.c.bf16 %v97, %v95
    %v101 = vunpack.c.l.bf16 %v99
    %v102 = vunpack.c.h.bf16 %v99
    %v103 = vunpack.c.l.bf16 %v100
    %v104 = vunpack.c.h.bf16 %v100
    %v105 = vtanh.pop %v101
    %v106 = vtanh.pop %v102
    %v107 = vtanh.pop %v103
    %v108 = vtanh.pop %v104
    %v109 = vpack.c.bf16 %v106, %v105
    %v110 = vpack.c.bf16 %v108, %v107
    %v111 = vld [vmem:[%s3] sm:$0xf]
    %v112 = vld [vmem:[%s3 + $0x4] sm:$0xf]
    %v113 = vld [vmem:[%s3 + $0x8] sm:$0xf]
    %v114 = vld [vmem:[%s3 + $0xc] sm:$0xf]
    %v115 = vld [vmem:[%s4] sm:$0xff]
    %v116 = vld [vmem:[%s4 + $0x8] sm:$0xff]
    %v117 = vld [vmem:[%s4 + $0x10] sm:$0xff]
    %v118 = vld [vmem:[%s4 + $0x18] sm:$0xff]
    %120 = vset.pattern.permute.xlu0 0
    %121 = vperm.xlu0 %120, %v115
    %v122 = vpop.permute.xlu0 %121
    %125 = vset.pattern.permute.xlu0 0
    %126 = vperm.xlu0 %125, %v116
    %v127 = vpop.permute.xlu0 %126
    %130 = vset.pattern.permute.xlu0 0
    %131 = vperm.xlu0 %130, %v117
    %v132 = vpop.permute.xlu0 %131
    %135 = vset.pattern.permute.xlu0 0
    %136 = vperm.xlu0 %135, %v118
    %v137 = vpop.permute.xlu0 %136
    %v143 = vunpack.c.l.b16 %v111
    %v144 = vunpack.c.l.b16 %v112
    %v145 = vunpack.c.l.b16 %v113
    %v146 = vunpack.c.l.b16 %v114
    %v147 = vpack.c.b16 %v144, %v143
    %v148 = vpack.c.b16 %v146, %v145
    %vm149 = vcmask 261120
    %v151 = vsel %vm149, %v147, 0
    %v154 = vsel %vm149, %v148, 0
    %156 = vmatpush.bf16.msra.mxu0 0
    %157 = vmatpush.bf16.msra.mxu0 0
    %158 = vmatpush.bf16.msra.mxu0 0
    %159 = vmatpush.bf16.msra.mxu0 0
    %160 = vmatpush.bf16.msra.mxu0 0
    %161 = vmatpush.bf16.msra.mxu0 0
    %162 = vmatpush.bf16.msra.mxu0 %v110
    %163 = vmatpush.bf16.msra.mxu0 %v109
    %164 = vmatmul.bf16.gmra.mxu0 %v151
    %v165 = vpop.f32.mrf.mxu0
    %v166 = vadd.f32 %v122, %v165
    %v167 = vpop.f32.mrf.mxu0
    %v168 = vadd.f32 %v127, %v167
    %169 = vmatmul.bf16.gmra.mxu0 %v154
    %v170 = vpop.f32.mrf.mxu0
    %v171 = vadd.f32 %v132, %v170
    %v172 = vpop.f32.mrf.mxu0
    %v173 = vadd.f32 %v137, %v172
    %174 = vdwg.mxu0
    %v175 = vpack.c.bf16 %v168, %v166
    %v176 = vpack.c.bf16 %v173, %v171
    %v177 = vunpack.c.l.bf16 %v175
    %v178 = vunpack.c.h.bf16 %v175
    %v179 = vunpack.c.l.bf16 %v176
    %v180 = vunpack.c.h.bf16 %v176
    %v181 = vtanh.pop %v177
    %v182 = vtanh.pop %v178
    %v183 = vtanh.pop %v179
    %v184 = vtanh.pop %v180
    %v185 = vpack.c.bf16 %v182, %v181
    %v186 = vpack.c.bf16 %v184, %v183
    %v187 = vld [vmem:[%s5] sm:$0x1]
    %v188 = vld [vmem:[#allocation2] sm:$0x1]
    %190 = vset.pattern.permute.xlu0 0
    %191 = vperm.xlu0 %190, %v188
    %v192 = vpop.permute.xlu0 %191
    %v194 = vperm.slane %v192, 0
    %v196 = vsel %vm149, %v187, 0
    %198 = vmatpush.bf16.msra.mxu0 0
    %199 = vmatpush.bf16.msra.mxu0 0
    %200 = vmatpush.bf16.msra.mxu0 0
    %201 = vmatpush.bf16.msra.mxu0 0
    %202 = vmatpush.bf16.msra.mxu0 0
    %203 = vmatpush.bf16.msra.mxu0 0
    %204 = vmatpush.bf16.msra.mxu0 %v186
    %205 = vmatpush.bf16.msra.mxu0 %v185
    %206 = vmatmul.bf16.gmra.mxu0 %v196
    %v207 = vpop.f32.mrf.mxu0
    %v208 = vadd.f32 %v194, %v207
    %v209 = vpop.f32.mrf.mxu0
    %210 = vdwg.mxu0
    %vm211 = vcmask 57344
    %212 = vst.msk [vmem:[#allocation3] sm:$0x1] %vm211, %v208
    // Predicated region
    $region30: #{tpu_custom_call.1} parent=1 // pred_check
      _
    $region31: #{tpu_custom_call.1} parent=1 // pred_check_branch
      %214 = sbr.rel (0) target = $region33
    $region32: #{tpu_custom_call.1} parent=1 // pred_region
      %216 = vsyncadd [#allocation4], 0
      %s218 = sshll.u32 [#allocation3], 4
      %s219 = int_to_ptr.vmem [resolvable:$true] %s218
      %s220 = sshll.u32 %s7, 4
      %s221 = int_to_ptr.hbm [resolvable:$true] %s220
      %223 = dma.vmem_to_hbm [thread:$0]  %s219, 16, %s221, [#allocation4]
    $region33: #{tpu_custom_call.1} parent=1 // pred_fallthru
      _
    // Predicated region
    $region34: #{tpu_custom_call.1} parent=1 // pred_check
      _
    $region35: #{tpu_custom_call.1} parent=1 // pred_check_branch
      %225 = sbr.rel (0) target = $region37
    $region36: #{tpu_custom_call.1} parent=1 // pred_region
      %227 = dma.done [#allocation4], 16
    $region37: #{tpu_custom_call.1} parent=1 // pred_fallthru
      _
    %228 = vsyncpa [#allocation4], 1

</llo_original>
